<compile_context>
chip_gen: v5e
topology: v5e:2x2
jax: 0.10.0
libtpu: 0.0.40
codegen_flags: <defaults>
</compile_context>

<pallas_src>
import functools

import jax
import jax.numpy as jnp
from jax.experimental import pallas as pl
from jax.experimental.pallas import tpu as pltpu


# ----------------------------------------------------------------------------
# Kernel: grid = (m_tiles, s_tiles); s is the spatial reduction axis.
# The output block index is constant along s, so o_ref stays resident in VMEM
# across the reduction and serves as the accumulator.
# ----------------------------------------------------------------------------
def _gap_kernel(x_ref, o_ref, *, inv_s):
    j = pl.program_id(1)

    @pl.when(j == 0)
    def _():
        o_ref[...] = jnp.zeros_like(o_ref)

    # Partial per-row sums over this spatial tile, accumulated in f32
    # straight into the output block (no separate scratch).
    o_ref[...] += jnp.sum(x_ref[...].astype(jnp.float32), axis=1, keepdims=True)

    @pl.when(j == pl.num_programs(1) - 1)
    def _():
        # Divide by the TRUE spatial size (zero padding columns don't bias it).
        o_ref[...] = o_ref[...] * inv_s


# ----------------------------------------------------------------------------
# Wrapper: NCHW -> [N*C, H*W] rows, pad to (8, 128) granularity, tile, call.
# ----------------------------------------------------------------------------
def global_avg_pool(x_nchw, *, tm=256, ts=2048):
    n, c, h, w = x_nchw.shape
    s = h * w
    m = n * c

    x2 = x_nchw.reshape(m, s)

    # Pad rows to a multiple of 8 (sublanes) and cols to a multiple of 128
    # (lanes) so the BlockSpec tiling constraint is always satisfied.  The
    # padded columns are zeros, which do not change the row sums.
    m_pad = (-m) % 8
    s_pad = (-s) % 128
    if m_pad or s_pad:
        x2 = jnp.pad(x2, ((0, m_pad), (0, s_pad)))
    M, S = x2.shape

    # Pick tile sizes that evenly divide the padded shape.
    tm = min(tm, M)
    while M % tm:
        tm -= 8
    ts = min(ts, S)
    while S % ts:
        ts -= 128

    grid = (M // tm, S // ts)
    inv_s = 1.0 / float(s)

    out = pl.pallas_call(
        functools.partial(_gap_kernel, inv_s=inv_s),
        out_shape=jax.ShapeDtypeStruct((M, 1), jnp.float32),
        grid_spec=pltpu.PrefetchScalarGridSpec(
            num_scalar_prefetch=0,
            grid=grid,
            in_specs=[pl.BlockSpec((tm, ts), lambda i, j: (i, j))],
            out_specs=pl.BlockSpec((tm, 1), lambda i, j: (i, 0)),
        ),
        compiler_params=pltpu.CompilerParams(
            dimension_semantics=("parallel", "arbitrary")),
    )(x2)

    return out[:m].reshape(n, c, 1, 1).astype(x_nchw.dtype)


# ----------------------------------------------------------------------------
if __name__ == "__main__":
    gap = jax.jit(global_avg_pool)

    # Primary small test.
    key = jax.random.PRNGKey(0)
    N, C, H, W = 2, 4, 16, 16
    x = jax.random.normal(key, (N, C, H, W), jnp.float32)

    y = jax.block_until_ready(gap(x))
    assert y.shape == (N, C, 1, 1), y.shape
    ref = jnp.mean(x, axis=(2, 3), keepdims=True)
    err = float(jnp.max(jnp.abs(y - ref)))
    assert err < 1e-5, f"max abs err too large: {err}"

    # resnet50.avgpool-like shape (2048 ch, 7x7) to exercise the padded path
    # (H*W = 49 -> padded to 128 lanes).
    x2 = jax.random.normal(jax.random.PRNGKey(1), (2, 2048, 7, 7), jnp.float32)
    y2 = jax.block_until_ready(gap(x2))
    ref2 = jnp.mean(x2, axis=(2, 3), keepdims=True)
    err2 = float(jnp.max(jnp.abs(y2 - ref2)))
    assert err2 < 1e-5, f"max abs err too large: {err2}"

    print("KERNEL_OK")
</pallas_src>

<mosaic_0001>
module attributes {stable_mosaic.version = 11 : i64} {
  func.func @_gap_kernel(%arg0: i32, %arg1: i32, %arg2: memref<8x256xf32, #tpu.memory_space<vmem>>, %arg3: memref<8x1xf32, #tpu.memory_space<vmem>>) attributes {dimension_semantics = [#tpu.dimension_semantics<parallel>, #tpu.dimension_semantics<arbitrary>], iteration_bounds = array<i64: 1, 1>, scalar_prefetch = 0 : i64, scratch_operands = 0 : i64, tpu.core_type = #tpu.core_type<tc>, window_params = [{transform_indices = @transform_0, window_bounds = array<i64: 8, 256>}, {transform_indices = @transform_1, window_bounds = array<i64: 8, 1>}]} {
    %c0_i32 = arith.constant 0 : i32
    %0 = arith.cmpi eq, %arg1, %c0_i32 : i32
    %1 = arith.extui %0 : i1 to i32
    %c0_i32_0 = arith.constant 0 : i32
    %2 = arith.cmpi ne, %1, %c0_i32_0 : i32
    scf.if %2 {
      %cst_8 = arith.constant 0.000000e+00 : f32
      %12 = vector.broadcast %cst_8 : f32 to vector<8x1xf32>
      %c0_9 = arith.constant 0 : index
      %c0_10 = arith.constant 0 : index
      %13 = vector.load %arg3[%c0_9, %c0_10] : memref<8x1xf32, #tpu.memory_space<vmem>>, vector<8x1xf32>
      tpu.vector_store %arg3[%c0_9, %c0_10], %12 {strides = array<i32>} : memref<8x1xf32, #tpu.memory_space<vmem>>, vector<8x1xf32>,
    } else {
    }
    %c0 = arith.constant 0 : index
    %c0_1 = arith.constant 0 : index
    %3 = vector.load %arg3[%c0, %c0_1] : memref<8x1xf32, #tpu.memory_space<vmem>>, vector<8x1xf32>
    %c0_2 = arith.constant 0 : index
    %c0_3 = arith.constant 0 : index
    %4 = vector.load %arg2[%c0_2, %c0_3] : memref<8x256xf32, #tpu.memory_space<vmem>>, vector<8x256xf32>
    %cst = arith.constant dense<0.000000e+00> : vector<8xf32>
    %5 = vector.multi_reduction <add>, %4, %cst [1] : vector<8x256xf32> to vector<8xf32>
    %6 = vector.shape_cast %5 : vector<8xf32> to vector<8x1xf32>
    %7 = arith.addf %3, %6 : vector<8x1xf32>
    %c0_4 = arith.constant 0 : index
    %c0_5 = arith.constant 0 : index
    %8 = vector.load %arg3[%c0_4, %c0_5] : memref<8x1xf32, #tpu.memory_space<vmem>>, vector<8x1xf32>
    tpu.vector_store %arg3[%c0_4, %c0_5], %7 {strides = array<i32>} : memref<8x1xf32, #tpu.memory_space<vmem>>, vector<8x1xf32>,
    %c0_i32_6 = arith.constant 0 : i32
    %9 = arith.cmpi eq, %arg1, %c0_i32_6 : i32
    %10 = arith.extui %9 : i1 to i32
    %c0_i32_7 = arith.constant 0 : i32
    %11 = arith.cmpi ne, %10, %c0_i32_7 : i32
    scf.if %11 {
      %c0_8 = arith.constant 0 : index
      %c0_9 = arith.constant 0 : index
      %12 = vector.load %arg3[%c0_8, %c0_9] : memref<8x1xf32, #tpu.memory_space<vmem>>, vector<8x1xf32>
      %cst_10 = arith.constant 3.906250e-03 : f32
      %13 = vector.broadcast %cst_10 : f32 to vector<8x1xf32>
      %14 = arith.mulf %12, %13 : vector<8x1xf32>
      %c0_11 = arith.constant 0 : index
      %c0_12 = arith.constant 0 : index
      %15 = vector.load %arg3[%c0_11, %c0_12] : memref<8x1xf32, #tpu.memory_space<vmem>>, vector<8x1xf32>
      tpu.vector_store %arg3[%c0_11, %c0_12], %14 {strides = array<i32>} : memref<8x1xf32, #tpu.memory_space<vmem>>, vector<8x1xf32>,
    } else {
    }
    return
  }
  func.func @transform_0(%arg0: i32, %arg1: i32) -> (i32, i32) {
    %c0_i32 = arith.constant 0 : i32
    return %arg0, %arg1 : i32, i32
  }
  func.func @transform_1(%arg0: i32, %arg1: i32) -> (i32, i32) {
    %c0_i32 = arith.constant 0 : i32
    %c0_i32_0 = arith.constant 0 : i32
    return %arg0, %c0_i32 : i32, i32
  }
}

</mosaic_0001>

<llo_original>
// kernel: global_avg_pool.1
$region0: #{global_avg_pool.1}
  #allocation0 [shape = 'u32[]', space=smem, size = 0x4, offset = 0x4, fixed_abs, tag = 'smem constant byte address 0x4 - core index']
  #allocation1 [shape = 'u32[72,128]{1,0:T(1,128)}', space=vmem, size = 0x9000, scoped, tag = 'internal scratch']
  %s0 = inlined_call_operand.vmem [shape: f32[8,256], index: 0, kind: input, shape index: {}]
  %s1 = inlined_call_operand.vmem [shape: f32[8,1], index: 1, kind: output, shape index: {}]
  %s2 = sld [smem:[#allocation0]]
  $region22: #{global_avg_pool.1} parent=0
    _
  %s4 = ssub.s32 1, %s2
  %s5 = scalar_select 0, %s4, %s2
  // Predicated region
  $region2: #{global_avg_pool.1} parent=0 // pred_check
    _
  $region3: #{global_avg_pool.1} parent=0 // pred_check_branch
    %7 = sbr.rel (0) target = $region5
  $region4: #{global_avg_pool.1} parent=0 // pred_region
    _
  $region5: #{global_avg_pool.1} parent=0 // pred_fallthru
    _
  %p8 = scmp.eq.s32.totalorder 0, 0
  // Predicated region
  $region6: #{global_avg_pool.1} parent=0 // pred_check
    %p9 = pneg %p8
  $region7: #{global_avg_pool.1} parent=0 // pred_check_branch
    %11 = sbr.rel (%p9) target = $region9
  $region8: #{global_avg_pool.1} parent=0 // pred_region
    %vm12 = vcmask 7168
    %13 = vst.msk [vmem:[%s1] sm:$0xff] %vm12, 0.0
  $region9: #{global_avg_pool.1} parent=0 // pred_fallthru
    _
  %v14 = vld [vmem:[%s1] sm:$0xff]
  %v15 = vld [vmem:[%s0] sm:$0xff]
  %v16 = vld [vmem:[%s0 + $0x8] sm:$0xff]
  %v17 = vadd.f32 %v15, %v16
  %18 = vadd.xlane.f32.xlu0 %v17
  %v19 = vpop.xlane.xlu0 %18
  %v20 = vadd.f32 %v14, %v19
  %vm21 = vcmask 7168
  %22 = vst.msk [vmem:[%s1] sm:$0xff] %vm21, %v20
  // Predicated region
  $region10: #{global_avg_pool.1} parent=0 // pred_check
    %p23 = pneg %p8
  $region11: #{global_avg_pool.1} parent=0 // pred_check_branch
    %25 = sbr.rel (%p23) target = $region13
  $region12: #{global_avg_pool.1} parent=0 // pred_region
    %v26 = vld [vmem:[%s1] sm:$0xff]
    %v27 = vmul.f32 %v26, 0.00390625
    %28 = vst.msk [vmem:[%s1] sm:$0xff] %vm21, %v27
  $region13: #{global_avg_pool.1} parent=0 // pred_fallthru
    _
  // Predicated region
  $region14: #{global_avg_pool.1} parent=0 // pred_check
    _
  $region15: #{global_avg_pool.1} parent=0 // pred_check_branch
    %30 = sbr.rel (0) target = $region17
  $region16: #{global_avg_pool.1} parent=0 // pred_region
    _
  $region17: #{global_avg_pool.1} parent=0 // pred_fallthru
    _
  // Predicated region
  $region18: #{global_avg_pool.1} parent=0 // pred_check
    _
  $region19: #{global_avg_pool.1} parent=0 // pred_check_branch
    %32 = sbr.rel (0) target = $region21
  $region20: #{global_avg_pool.1} parent=0 // pred_region
    _
  $region21: #{global_avg_pool.1} parent=0 // pred_fallthru
    _

</llo_original>
